<compile_context>
chip_gen: v7x
topology: tpu7x:2x2x1
jax: 0.10.0
libtpu: 0.0.40
codegen_flags: <defaults>
</compile_context>

<pallas_src>
import functools

import jax
import jax.numpy as jnp
from jax.experimental import pallas as pl
from jax.experimental.pallas import tpu as pltpu

LANES = 128
SUBLANES = 8


def _tpu_config():
    """Returns (num_tensorcores_to_split_over, per-input tile byte target)."""
    try:
        kind = jax.devices()[0].device_kind.lower()
    except Exception:
        kind = ""
    if "v7" in kind or "7x" in kind:
        # 2 TCs; 4 MiB/input tile -> 16 MiB double-buffered (< 32 MiB scoped VMEM).
        return 2, 4 * 1024 * 1024
    # v6e / v5e / unknown: 1 TC; 2 MiB/input tile -> 8 MiB double-buffered
    # (fits v5e's 16 MiB default scoped VMEM with headroom).
    return 1, 2 * 1024 * 1024


def _mse_partial_kernel(p_ref, t_ref, o_ref, *, valid_rows, blocks_per_core,
                        needs_mask, acc_rows):
    """Accumulate per-(row%acc_rows, lane) partial sums of (p - t)^2 into o_ref.

    o_ref is an (acc_rows, 128) f32 block, resident across the reduction
    ("arbitrary") grid axis; one partial block per "core" grid index.  The
    cross-lane reduce, mean division and scaling happen in the wrapper.
    """
    c = pl.program_id(0)
    i = pl.program_id(1)

    @pl.when(i == 0)
    def _():
        o_ref[...] = jnp.zeros_like(o_ref)

    block_rows = p_ref.shape[0]
    d = p_ref[...].astype(jnp.float32) - t_ref[...].astype(jnp.float32)
    sq = d * d

    def fold(vals):
        # Pure elementwise (VPU) adds into acc_rows//8 independent vreg groups.
        return jnp.sum(vals.reshape(-1, acc_rows, LANES), axis=0)

    if needs_mask:
        # Logical (un-clamped) block index; only the tail / duplicated block(s)
        # pay the iota+select cost, interior blocks take the fast path below.
        blk = c * blocks_per_core + i
        base_row = blk * block_rows
        is_tail = base_row + block_rows > valid_rows

        @pl.when(jnp.logical_not(is_tail))
        def _():
            o_ref[...] += fold(sq)

        @pl.when(is_tail)
        def _():
            # select (not multiply-by-mask) so NaN/Inf garbage never propagates.
            row_ids = base_row + jax.lax.broadcasted_iota(jnp.int32, sq.shape, 0)
            o_ref[...] += fold(jnp.where(row_ids < valid_rows, sq, 0.0))
    else:
        o_ref[...] += fold(sq)


def custom_mse_loss(predicted, target, scale_factor=1.0, *,
                    tile_bytes=None, num_cores=None):
    """scale_factor * mean((predicted - target)**2), computed in a Pallas kernel."""
    assert predicted.shape == target.shape, "MSELoss requires matching shapes here"
    n_elems = predicted.size
    assert n_elems > 0

    det_cores, det_bytes = _tpu_config()
    if num_cores is None:
        num_cores = det_cores
    if tile_bytes is None:
        tile_bytes = det_bytes

    # Contiguous flatten is free (no data movement).
    p_flat = predicted.reshape(-1)
    t_flat = target.reshape(-1)

    # Ragged <128-element remainder handled in the wrapper (tiny); no jnp.pad
    # of the full inputs anywhere.
    rem = n_elems % LANES
    bulk = n_elems - rem
    tail_sum = jnp.float32(0.0)
    if rem:
        tp = p_flat[bulk:].astype(jnp.float32)
        tt = t_flat[bulk:].astype(jnp.float32)
        td = tp - tt
        tail_sum = jnp.sum(td * td)
        if bulk:
            # TODO(synk): for non-128-multiple sizes XLA may materialize this prefix
            # slice; transformer shapes are 128-multiples so this path is cold.
            p_flat = p_flat[:bulk]
            t_flat = t_flat[:bulk]

    if bulk == 0:
        # Whole tensor fits in the remainder path.
        return tail_sum * (scale_factor / n_elems)

    rows = bulk // LANES
    p2 = p_flat.reshape(rows, LANES)
    t2 = t_flat.reshape(rows, LANES)

    # Resident accumulator height: 32 rows (4 independent vreg groups for ILP),
    # falling back to 8 for tiny inputs.
    acc_rows = 32 if rows >= 32 else SUBLANES

    # Rows per block from the per-input byte target (bf16 inputs automatically
    # get 2x the rows); forced to a multiple of acc_rows (and hence of 8/16).
    elt_bytes = jnp.dtype(predicted.dtype).itemsize
    br_target = max(acc_rows, tile_bytes // (LANES * elt_bytes))
    br = max(acc_rows, (min(br_target, rows) // acc_rows) * acc_rows)

    nb = pl.cdiv(rows, br)                     # row-blocks backed by data
    ncores = max(1, min(num_cores, nb))        # megacore split only when useful
    bpc = pl.cdiv(nb, ncores)                  # row-blocks per core
    needs_mask = (ncores * bpc * br) != rows   # partial tail and/or duplicated block

    def in_map(c, i):
        # Clamp so the DMA never targets a fully out-of-bounds block; the kernel
        # masks tail / duplicated rows using the un-clamped logical index.
        blk = c * bpc + i
        return (jnp.minimum(blk, nb - 1), 0)

    kernel = functools.partial(
        _mse_partial_kernel, valid_rows=rows, blocks_per_core=bpc,
        needs_mask=needs_mask, acc_rows=acc_rows)

    partials = pl.pallas_call(
        kernel,
        out_shape=jax.ShapeDtypeStruct((ncores, acc_rows, LANES), jnp.float32),
        grid_spec=pltpu.PrefetchScalarGridSpec(
            num_scalar_prefetch=0,
            grid=(ncores, bpc),
            in_specs=[
                pl.BlockSpec((br, LANES), in_map),
                pl.BlockSpec((br, LANES), in_map),
            ],
            out_specs=pl.BlockSpec((None, acc_rows, LANES), lambda c, i: (c, 0, 0)),
        ),
        compiler_params=pltpu.CompilerParams(
            dimension_semantics=("parallel", "arbitrary"),
        ),
    )(p2, t2)

    # Tiny epilogue: final cross-lane reduce + remainder + mean + scale.
    total = jnp.sum(partials) + tail_sum
    return total * (scale_factor / n_elems)


if __name__ == "__main__":
    key = jax.random.PRNGKey(0)
    k1, k2, k3, k4, k5, k6 = jax.random.split(key, 6)

    # --- main check: shape consistent with the module usage -----------------
    shape = (2, 4, 16, 16)
    predicted = jax.random.normal(k1, shape, dtype=jnp.float32)
    target = jax.random.normal(k2, shape, dtype=jnp.float32)
    scale_factor = 2.5

    loss = custom_mse_loss(predicted, target, scale_factor)
    loss = jax.block_until_ready(loss)
    ref = scale_factor * jnp.mean((predicted - target) ** 2)
    assert jnp.allclose(loss, ref, rtol=1e-5, atol=1e-6), (loss, ref)

    # --- ragged size: multi-block + in-kernel tail mask + wrapper remainder --
    # 3076 elems -> 4-elem remainder in wrapper, rows=24; forced 8-row blocks
    # and 2 "cores" exercise both the tail mask and the duplicated-block clamp.
    shape2 = (4, 769)
    p2 = jax.random.normal(k3, shape2, dtype=jnp.float32)
    t2 = jax.random.normal(k4, shape2, dtype=jnp.float32)
    loss2 = custom_mse_loss(p2, t2, 0.7, tile_bytes=8 * LANES * 4, num_cores=2)
    loss2 = jax.block_until_ready(loss2)
    ref2 = 0.7 * jnp.mean((p2 - t2) ** 2)
    assert jnp.allclose(loss2, ref2, rtol=1e-4, atol=1e-6), (loss2, ref2)

    # --- bf16 inputs: kernel upcasts per tile ---------------------------------
    shape3 = (8, 256)
    p3 = jax.random.normal(k5, shape3, dtype=jnp.bfloat16)
    t3 = jax.random.normal(k6, shape3, dtype=jnp.bfloat16)
    loss3 = custom_mse_loss(p3, t3, 1.3)
    loss3 = jax.block_until_ready(loss3)
    ref3 = 1.3 * jnp.mean((p3.astype(jnp.float32) - t3.astype(jnp.float32)) ** 2)
    assert jnp.allclose(loss3, ref3, rtol=1e-3, atol=1e-5), (loss3, ref3)

    print("KERNEL_OK")
</pallas_src>

<mosaic_0001>
module attributes {stable_mosaic.version = 11 : i64} {
  func.func @_mse_partial_kernel(%arg0: i32, %arg1: i32, %arg2: memref<16x128xf32, #tpu.memory_space<vmem>>, %arg3: memref<16x128xf32, #tpu.memory_space<vmem>>, %arg4: memref<1x8x128xf32, #tpu.memory_space<vmem>>) attributes {dimension_semantics = [#tpu.dimension_semantics<parallel>, #tpu.dimension_semantics<arbitrary>], iteration_bounds = array<i64: 1, 1>, scalar_prefetch = 0 : i64, scratch_operands = 0 : i64, tpu.core_type = #tpu.core_type<tc>, window_params = [{transform_indices = @transform_0, window_bounds = array<i64: 16, 128>}, {transform_indices = @transform_1, window_bounds = array<i64: 16, 128>}, {transform_indices = @transform_2, window_bounds = array<i64: 1, 8, 128>}]} {
    %c0_i32 = arith.constant 0 : i32
    %0 = arith.cmpi eq, %arg1, %c0_i32 : i32
    %1 = arith.extui %0 : i1 to i32
    %c0_i32_0 = arith.constant 0 : i32
    %2 = arith.cmpi ne, %1, %c0_i32_0 : i32
    scf.if %2 {
      %cst_10 = arith.constant 0.000000e+00 : f32
      %15 = vector.broadcast %cst_10 : f32 to vector<8x128xf32>
      %c0_11 = arith.constant 0 : index
      %c0_12 = arith.constant 0 : index
      %c0_13 = arith.constant 0 : index
      %16 = vector.load %arg4[%c0_11, %c0_12, %c0_13] : memref<1x8x128xf32, #tpu.memory_space<vmem>>, vector<1x8x128xf32>
      %17 = vector.shape_cast %16 : vector<1x8x128xf32> to vector<8x128xf32>
      %18 = vector.shape_cast %15 : vector<8x128xf32> to vector<1x8x128xf32>
      tpu.vector_store %arg4[%c0_11, %c0_12, %c0_13], %18 {strides = array<i32>} : memref<1x8x128xf32, #tpu.memory_space<vmem>>, vector<1x8x128xf32>,
    } else {
    }
    %c0 = arith.constant 0 : index
    %c0_1 = arith.constant 0 : index
    %3 = vector.load %arg2[%c0, %c0_1] : memref<16x128xf32, #tpu.memory_space<vmem>>, vector<16x128xf32>
    %c0_2 = arith.constant 0 : index
    %c0_3 = arith.constant 0 : index
    %4 = vector.load %arg3[%c0_2, %c0_3] : memref<16x128xf32, #tpu.memory_space<vmem>>, vector<16x128xf32>
    %5 = arith.subf %3, %4 : vector<16x128xf32>
    %6 = arith.mulf %5, %5 : vector<16x128xf32>
    %c0_4 = arith.constant 0 : index
    %c0_5 = arith.constant 0 : index
    %c0_6 = arith.constant 0 : index
    %7 = vector.load %arg4[%c0_4, %c0_5, %c0_6] : memref<1x8x128xf32, #tpu.memory_space<vmem>>, vector<1x8x128xf32>
    %8 = vector.shape_cast %7 : vector<1x8x128xf32> to vector<8x128xf32>
    %9 = vector.shape_cast %6 : vector<16x128xf32> to vector<2x8x128xf32>
    %cst = arith.constant dense<0.000000e+00> : vector<8x128xf32>
    %10 = vector.multi_reduction <add>, %9, %cst [0] : vector<2x8x128xf32> to vector<8x128xf32>
    %11 = arith.addf %8, %10 : vector<8x128xf32>
    %c0_7 = arith.constant 0 : index
    %c0_8 = arith.constant 0 : index
    %c0_9 = arith.constant 0 : index
    %12 = vector.load %arg4[%c0_7, %c0_8, %c0_9] : memref<1x8x128xf32, #tpu.memory_space<vmem>>, vector<1x8x128xf32>
    %13 = vector.shape_cast %12 : vector<1x8x128xf32> to vector<8x128xf32>
    %14 = vector.shape_cast %11 : vector<8x128xf32> to vector<1x8x128xf32>
    tpu.vector_store %arg4[%c0_7, %c0_8, %c0_9], %14 {strides = array<i32>} : memref<1x8x128xf32, #tpu.memory_space<vmem>>, vector<1x8x128xf32>,
    return
  }
  func.func @transform_0(%arg0: i32, %arg1: i32) -> (i32, i32) {
    %c1_i32 = arith.constant 1 : i32
    %0 = arith.muli %arg0, %c1_i32 : i32
    %1 = arith.addi %0, %arg1 : i32
    %c0_i32 = arith.constant 0 : i32
    %2 = arith.minsi %1, %c0_i32 : i32
    %c0_i32_0 = arith.constant 0 : i32
    %c0_i32_1 = arith.constant 0 : i32
    return %2, %c0_i32_0 : i32, i32
  }
  func.func @transform_1(%arg0: i32, %arg1: i32) -> (i32, i32) {
    %c1_i32 = arith.constant 1 : i32
    %0 = arith.muli %arg0, %c1_i32 : i32
    %1 = arith.addi %0, %arg1 : i32
    %c0_i32 = arith.constant 0 : i32
    %2 = arith.minsi %1, %c0_i32 : i32
    %c0_i32_0 = arith.constant 0 : i32
    %c0_i32_1 = arith.constant 0 : i32
    return %2, %c0_i32_0 : i32, i32
  }
  func.func @transform_2(%arg0: i32, %arg1: i32) -> (i32, i32, i32) {
    %c0_i32 = arith.constant 0 : i32
    %c0_i32_0 = arith.constant 0 : i32
    %c0_i32_1 = arith.constant 0 : i32
    return %arg0, %c0_i32, %c0_i32_0 : i32, i32, i32
  }
}

</mosaic_0001>

<llo_original>
// kernel: tpu_custom_call.1
$region0: #{tpu_custom_call.1}
  #allocation0 [shape = 'u32[]', space=smem, size = 0x4, offset = 0x4, fixed_abs, tag = 'smem constant byte address 0x4 - core index']
  #allocation1 [shape = 'u32[144,128]{1,0:T(1,128)}', space=vmem, size = 0x12000, scoped, tag = 'internal scratch']
  %s0 = inlined_call_operand.hbm [shape: f32[16,128], index: 0, kind: input, shape index: {}]
  %s1 = inlined_call_operand.hbm [shape: f32[16,128], index: 1, kind: input, shape index: {}]
  %s2 = inlined_call_operand.hbm [shape: f32[1,8,128], index: 2, kind: output, shape index: {}]
  %s3 = sld [smem:[#allocation0]]
  $region30: #{tpu_custom_call.1} parent=0
    _
  %s5 = ssub.s32 1, %s3
  %s6 = scalar_select 0, %s5, %s3
  $region1: #{tpu_custom_call.1} parent=0
    #allocation2 [shape = 'u8[8192]{0}', space=vmem, size = 0x2000, scoped, tag = 'input window, operand 0, single buffered']
    #allocation3 [shape = 's32[1]{0}', space=sflag, size = 0x4, scoped, tag = 'scoped memory for tpu_custom_call.1']
    #allocation4 [shape = 's32[1]{0}', space=sflag, size = 0x4, scoped, tag = 'scoped memory for tpu_custom_call.1']
    #allocation5 [shape = 'u8[8192]{0}', space=vmem, size = 0x2000, scoped, tag = 'input window, operand 1, single buffered']
    #allocation6 [shape = 's32[1]{0}', space=sflag, size = 0x4, scoped, tag = 'scoped memory for tpu_custom_call.1']
    #allocation7 [shape = 'u8[4096]{0}', space=vmem, size = 0x1000, scoped, tag = 'output window, operand 0, single buffered']
    %7 = vsyncpa [#allocation3], 0
    %8 = vsyncpa [#allocation6], 0
    %9 = vsyncpa [#allocation4], 0
    // Predicated region
    $region2: #{tpu_custom_call.1} parent=1 // pred_check
      _
    $region3: #{tpu_custom_call.1} parent=1 // pred_check_branch
      %11 = sbr.rel (0) target = $region5
    $region4: #{tpu_custom_call.1} parent=1 // pred_region
      %s12 = sadd.s32 0, 0
      %p13 = scmp.lt.s32.totalorder %s12, 0
      %s14 = scalar_select %p13, %s12, 0
      %s15 = smul.u32 2, %s14
      %s17 = ssub.s32 256, 256
      %18 = vsyncadd [#allocation3], %s17
      %s19 = smul.addr %s15, 128
      %s20 = scalar_lea.hbm %s0, %s19
      %s21 = sshll.u32 [#allocation2], 4
      %s22 = int_to_ptr.vmem [resolvable:$true] %s21
      %27 = dma.hbm_to_vmem [thread:$0]  %s20, 256, %s22, [#allocation3], 128, 128, 8
    $region5: #{tpu_custom_call.1} parent=1 // pred_fallthru
      _
    // Predicated region
    $region6: #{tpu_custom_call.1} parent=1 // pred_check
      _
    $region7: #{tpu_custom_call.1} parent=1 // pred_check_branch
      %29 = sbr.rel (0) target = $region9
    $region8: #{tpu_custom_call.1} parent=1 // pred_region
      %s30 = sadd.s32 0, 0
      %p31 = scmp.lt.s32.totalorder %s30, 0
      %s32 = scalar_select %p31, %s30, 0
      %s33 = smul.u32 2, %s32
      %s35 = ssub.s32 256, 256
      %36 = vsyncadd [#allocation6], %s35
      %s37 = smul.addr %s33, 128
      %s38 = scalar_lea.hbm %s1, %s37
      %s39 = sshll.u32 [#allocation5], 4
      %s40 = int_to_ptr.vmem [resolvable:$true] %s39
      %45 = dma.hbm_to_vmem [thread:$0]  %s38, 256, %s40, [#allocation6], 128, 128, 8
    $region9: #{tpu_custom_call.1} parent=1 // pred_fallthru
      _
    // Predicated region
    $region10: #{tpu_custom_call.1} parent=1 // pred_check
      _
    $region11: #{tpu_custom_call.1} parent=1 // pred_check_branch
      %47 = sbr.rel (0) target = $region13
    $region12: #{tpu_custom_call.1} parent=1 // pred_region
      %48 = dma.done [#allocation3], 256
    $region13: #{tpu_custom_call.1} parent=1 // pred_fallthru
      _
    // Predicated region
    $region14: #{tpu_custom_call.1} parent=1 // pred_check
      _
    $region15: #{tpu_custom_call.1} parent=1 // pred_check_branch
      %50 = sbr.rel (0) target = $region17
    $region16: #{tpu_custom_call.1} parent=1 // pred_region
      %51 = dma.done [#allocation6], 256
    $region17: #{tpu_custom_call.1} parent=1 // pred_fallthru
      _
    %s52 = sadd.s32 0, 0
    %p53 = scmp.lt.s32.totalorder %s52, 0
    %s54 = scalar_select %p53, %s52, 0
    %s55 = smul.u32 2, %s54
    %s56 = sadd.s32 0, 0
    %p57 = scmp.lt.s32.totalorder %s56, 0
    %s58 = scalar_select %p57, %s56, 0
    %s59 = smul.u32 2, %s58
    %p60 = scmp.eq.s32.totalorder 0, 0
    // Predicated region
    $region18: #{tpu_custom_call.1} parent=1 // pred_check
      %p61 = pneg %p60
    $region19: #{tpu_custom_call.1} parent=1 // pred_check_branch
      %63 = sbr.rel (%p61) target = $region21
    $region20: #{tpu_custom_call.1} parent=1 // pred_region
      %64 = vst [vmem:[#allocation7] sm:$0xff] 0.0
    $region21: #{tpu_custom_call.1} parent=1 // pred_fallthru
      _
    %v65 = vld [vmem:[#allocation2] sm:$0xff]
    %v66 = vld [vmem:[#allocation2 + $0x8] sm:$0xff]
    %v67 = vld [vmem:[#allocation5] sm:$0xff]
    %v68 = vld [vmem:[#allocation5 + $0x8] sm:$0xff]
    %v69 = vsub.f32 %v65, %v67
    %v70 = vsub.f32 %v66, %v68
    %v71 = vmul.f32 %v69, %v69
    %v72 = vmul.f32 %v70, %v70
    %v73 = vld [vmem:[#allocation7] sm:$0xff]
    %v74 = vadd.f32 %v71, %v72
    %v75 = vadd.f32 %v73, %v74
    %76 = vst [vmem:[#allocation7] sm:$0xff] %v75
    // Predicated region
    $region22: #{tpu_custom_call.1} parent=1 // pred_check
      _
    $region23: #{tpu_custom_call.1} parent=1 // pred_check_branch
      %78 = sbr.rel (0) target = $region25
    $region24: #{tpu_custom_call.1} parent=1 // pred_region
      %s80 = ssub.s32 128, 128
      %81 = vsyncadd [#allocation4], %s80
      %s83 = sshll.u32 [#allocation7], 4
      %s84 = int_to_ptr.vmem [resolvable:$true] %s83
      %86 = dma.vmem_to_hbm [thread:$0]  %s84, 128, %s2, [#allocation4]
    $region25: #{tpu_custom_call.1} parent=1 // pred_fallthru
      _
    // Predicated region
    $region26: #{tpu_custom_call.1} parent=1 // pred_check
      _
    $region27: #{tpu_custom_call.1} parent=1 // pred_check_branch
      %88 = sbr.rel (0) target = $region29
    $region28: #{tpu_custom_call.1} parent=1 // pred_region
      %89 = dma.done [#allocation4], 128
    $region29: #{tpu_custom_call.1} parent=1 // pred_fallthru
      _
    %90 = vsyncpa [#allocation3], 1
    %91 = vsyncpa [#allocation6], 1
    %92 = vsyncpa [#allocation4], 1

</llo_original>
